<compile_context>
chip_gen: v7x
topology: tpu7x:2x2x1
jax: 0.10.0
libtpu: 0.0.40
codegen_flags: <defaults>
</compile_context>

<pallas_src>
import functools

import jax
import jax.numpy as jnp
from jax.experimental import pallas as pl
from jax.experimental.pallas import tpu as pltpu

BN_EPS = 1e-5


def fused_conv_hswish_bn_kernel(x_ref, w_ref, b_ref, ringv_ref, gamma_ref, beta_ref,
                                o_ref, ring_ref, *, ring_count, total_count):
    # x_ref:     (N, Cin, HW)  f32 VMEM   -- HW = H*W interior pixels, lane-dense
    # w_ref:     (Cout*Cin,)   f32 SMEM   -- row-major: w[co*Cin + ci]
    # b_ref, ringv_ref, gamma_ref, beta_ref: (Cout,) f32 SMEM
    # o_ref:     (N, Cout, HW) f32 VMEM   -- normalized interior pixels
    # ring_ref:  (Cout, 128)   f32 VMEM   -- normalized ring constant, broadcast per row
    n, cin, hw = x_ref.shape
    cout = o_ref.shape[1]
    inv_m = 1.0 / float(total_count)
    rc = float(ring_count)

    # One contiguous VMEM load; per-channel slices are taken on the value, not the ref,
    # so Mosaic does not materialize strided middle-dim ref views.
    x = x_ref[...]                              # (N, Cin, HW)
    xc = [x[:, ci, :] for ci in range(cin)]     # each (N, HW), lane-dense

    for co in range(cout):
        # 1x1 conv for this output channel: SMEM-scalar x vector MACs on the VPU.
        # (A 3x3 channel contraction is the wrong regime for the MXU -- keep it here.)
        v1 = b_ref[co] + w_ref[co * cin] * xc[0]
        for ci in range(1, cin):
            v1 = v1 + w_ref[co * cin + ci] * xc[ci]
        # v2..v6 of the PyTorch graph: v1 * clamp(v1 + 3, 0, 6) / 6
        v6 = v1 * jnp.clip(v1 + 3.0, 0.0, 6.0) * (1.0 / 6.0)

        # BatchNorm2d (training mode): batch mean / biased variance over all N*Hp*Wp
        # conv-output pixels of this channel. The conv's zero-padding ring is never
        # materialized: post-gate it is the per-channel constant hardswish(bias)
        # (ringv_ref), so its contribution is added analytically.
        rv = ringv_ref[co]
        s = jnp.sum(v6) + rc * rv
        sq = jnp.sum(v6 * v6) + rc * (rv * rv)
        mean = s * inv_m
        var = jnp.maximum(sq * inv_m - mean * mean, 0.0)
        scale = jax.lax.rsqrt(var + BN_EPS) * gamma_ref[co]
        shift = beta_ref[co]

        o_ref[:, co, :] = (v6 - mean) * scale + shift
        # Normalized ring constant for this channel (consumed by the wrapper assembly).
        ring_ref[co, :] = jnp.full((128,), (rv - mean) * scale + shift, dtype=jnp.float32)


def model_forward(x_nchw, conv_w_oihw, conv_b, bn_gamma, bn_beta):
    N, Cin, H, W = x_nchw.shape
    Cout = conv_w_oihw.shape[0]
    Hp, Wp = H + 2, W + 2           # Conv2d(.., 1, stride=1, padding=1) output spatial
    HW = H * W
    ring_count = N * (Hp * Wp - HW)  # pad-ring pixels per channel (included in BN stats)
    total_count = N * Hp * Wp

    x32 = x_nchw.astype(jnp.float32)
    x_slab = x32.reshape(N, Cin, HW)                      # free reshape, pixels lane-dense
    w_flat = conv_w_oihw.reshape(Cout * Cin).astype(jnp.float32)
    b32 = conv_b.astype(jnp.float32)
    # Post-gate value of the conv's zero-padding ring: hardswish(bias), per channel.
    ring_v = b32 * jnp.clip(b32 + 3.0, 0.0, 6.0) * (1.0 / 6.0)

    kernel = functools.partial(fused_conv_hswish_bn_kernel,
                               ring_count=ring_count, total_count=total_count)

    # TODO(synk): for large N*H*W, switch to a two-phase tiled grid over the pixel axis
    # (partial sum/sumsq with pl.when init/finalize, then a normalize pass, "parallel"
    # non-reduction axes) to fit v7x's 64 MiB VMEM and use both TensorCores.
    out_slab, ring_norm = pl.pallas_call(
        kernel,
        out_shape=(
            jax.ShapeDtypeStruct((N, Cout, HW), jnp.float32),
            jax.ShapeDtypeStruct((Cout, 128), jnp.float32),
        ),
        in_specs=[
            pl.BlockSpec(memory_space=pltpu.MemorySpace.VMEM),
            pl.BlockSpec(memory_space=pltpu.MemorySpace.SMEM),
            pl.BlockSpec(memory_space=pltpu.MemorySpace.SMEM),
            pl.BlockSpec(memory_space=pltpu.MemorySpace.SMEM),
            pl.BlockSpec(memory_space=pltpu.MemorySpace.SMEM),
            pl.BlockSpec(memory_space=pltpu.MemorySpace.SMEM),
        ],
        out_specs=(
            pl.BlockSpec(memory_space=pltpu.MemorySpace.VMEM),
            pl.BlockSpec(memory_space=pltpu.MemorySpace.VMEM),
        ),
    )(
        x_slab,
        w_flat,
        b32,
        ring_v,
        bn_gamma.astype(jnp.float32),
        bn_beta.astype(jnp.float32),
    )

    # Cheap wrapper assembly of the padded output: fill with the normalized per-channel
    # ring constant, then drop the normalized interior in (pure reshape, no transpose).
    ring_c = ring_norm[:, 0]                               # (Cout,)
    full = jnp.broadcast_to(ring_c[None, :, None, None], (N, Cout, Hp, Wp))
    full = full.at[:, :, 1:H + 1, 1:W + 1].set(out_slab.reshape(N, Cout, H, W))
    return full


def _reference(x, conv_w, conv_b, bn_gamma, bn_beta):
    # Pure-JAX reference of the PyTorch graph (conv -> hardswish gate -> BN training).
    xp = jnp.pad(x, ((0, 0), (0, 0), (1, 1), (1, 1)))
    w2 = conv_w.reshape(conv_w.shape[0], conv_w.shape[1])
    v1 = jnp.einsum("oc,nchw->nohw", w2, xp) + conv_b[None, :, None, None]
    v6 = v1 * jnp.clip(v1 + 3.0, 0.0, 6.0) / 6.0
    mean = v6.mean(axis=(0, 2, 3), keepdims=True)
    var = v6.var(axis=(0, 2, 3), keepdims=True)            # biased, matches BN training
    return (v6 - mean) * jax.lax.rsqrt(var + BN_EPS) * bn_gamma[None, :, None, None] \
        + bn_beta[None, :, None, None]


if __name__ == "__main__":
    key = jax.random.PRNGKey(0)
    k_x, k_w, k_b = jax.random.split(key, 3)

    # Small shapes consistent with the module (Conv2d in=3, out=3): N=2, C=3, H=W=16.
    # H*W = 256 -> lane-dense (multiple of 128) interior slab.
    N, C, H, W = 2, 3, 16, 16
    x = jax.random.normal(k_x, (N, C, H, W), dtype=jnp.float32)

    conv_w = jax.random.normal(k_w, (3, 3, 1, 1), dtype=jnp.float32) * 0.5  # (Cout,Cin,1,1)
    conv_b = jax.random.normal(k_b, (3,), dtype=jnp.float32) * 0.1
    bn_gamma = jnp.ones((3,), dtype=jnp.float32)   # BatchNorm2d default weight
    bn_beta = jnp.zeros((3,), dtype=jnp.float32)   # BatchNorm2d default bias

    out = model_forward(x, conv_w, conv_b, bn_gamma, bn_beta)
    jax.block_until_ready(out)

    assert out.shape == (N, 3, H + 2, W + 2), out.shape
    ref = _reference(x, conv_w, conv_b, bn_gamma, bn_beta)
    err = float(jnp.max(jnp.abs(out - ref)))
    assert jnp.allclose(out, ref, atol=1e-4, rtol=1e-4), err
    print("KERNEL_OK")
</pallas_src>

<mosaic_0001>
module attributes {stable_mosaic.version = 11 : i64} {
  func.func @fused_conv_hswish_bn_kernel(%arg0: memref<2x3x256xf32, #tpu.memory_space<vmem>>, %arg1: memref<9xf32, #tpu.memory_space<smem>>, %arg2: memref<3xf32, #tpu.memory_space<smem>>, %arg3: memref<3xf32, #tpu.memory_space<smem>>, %arg4: memref<3xf32, #tpu.memory_space<smem>>, %arg5: memref<3xf32, #tpu.memory_space<smem>>, %arg6: memref<2x3x256xf32, #tpu.memory_space<vmem>>, %arg7: memref<3x128xf32, #tpu.memory_space<vmem>>) attributes {dimension_semantics = [], scalar_prefetch = 0 : i64, scratch_operands = 0 : i64, tpu.core_type = #tpu.core_type<tc>} {
    %c0 = arith.constant 0 : index
    %c0_0 = arith.constant 0 : index
    %c0_1 = arith.constant 0 : index
    %0 = vector.load %arg0[%c0, %c0_0, %c0_1] : memref<2x3x256xf32, #tpu.memory_space<vmem>>, vector<2x3x256xf32>
    %1 = vector.extract_strided_slice %0 {offsets = [0, 0, 0], sizes = [2, 1, 256], strides = [1, 1, 1]} : vector<2x3x256xf32> to vector<2x1x256xf32>
    %2 = vector.shape_cast %1 : vector<2x1x256xf32> to vector<2x256xf32>
    %3 = vector.extract_strided_slice %0 {offsets = [0, 1, 0], sizes = [2, 1, 256], strides = [1, 1, 1]} : vector<2x3x256xf32> to vector<2x1x256xf32>
    %4 = vector.shape_cast %3 : vector<2x1x256xf32> to vector<2x256xf32>
    %5 = vector.extract_strided_slice %0 {offsets = [0, 2, 0], sizes = [2, 1, 256], strides = [1, 1, 1]} : vector<2x3x256xf32> to vector<2x1x256xf32>
    %6 = vector.shape_cast %5 : vector<2x1x256xf32> to vector<2x256xf32>
    %c0_2 = arith.constant 0 : index
    %7 = memref.load %arg2[%c0_2] : memref<3xf32, #tpu.memory_space<smem>>
    %c0_3 = arith.constant 0 : index
    %8 = memref.load %arg1[%c0_3] : memref<9xf32, #tpu.memory_space<smem>>
    %9 = vector.broadcast %8 : f32 to vector<2x256xf32>
    %10 = arith.mulf %9, %2 : vector<2x256xf32>
    %11 = vector.broadcast %7 : f32 to vector<2x256xf32>
    %12 = arith.addf %11, %10 : vector<2x256xf32>
    %c1 = arith.constant 1 : index
    %13 = memref.load %arg1[%c1] : memref<9xf32, #tpu.memory_space<smem>>
    %14 = vector.broadcast %13 : f32 to vector<2x256xf32>
    %15 = arith.mulf %14, %4 : vector<2x256xf32>
    %16 = arith.addf %12, %15 : vector<2x256xf32>
    %c2 = arith.constant 2 : index
    %17 = memref.load %arg1[%c2] : memref<9xf32, #tpu.memory_space<smem>>
    %18 = vector.broadcast %17 : f32 to vector<2x256xf32>
    %19 = arith.mulf %18, %6 : vector<2x256xf32>
    %20 = arith.addf %16, %19 : vector<2x256xf32>
    %cst = arith.constant 3.000000e+00 : f32
    %21 = vector.broadcast %cst : f32 to vector<2x256xf32>
    %22 = arith.addf %20, %21 : vector<2x256xf32>
    %cst_4 = arith.constant 0.000000e+00 : f32
    %cst_5 = arith.constant 6.000000e+00 : f32
    %23 = vector.broadcast %cst_4 : f32 to vector<2x256xf32>
    %24 = arith.maximumf %23, %22 : vector<2x256xf32>
    %25 = vector.broadcast %cst_5 : f32 to vector<2x256xf32>
    %26 = arith.minimumf %25, %24 : vector<2x256xf32>
    %27 = arith.mulf %20, %26 : vector<2x256xf32>
    %cst_6 = arith.constant 0.166666672 : f32
    %28 = vector.broadcast %cst_6 : f32 to vector<2x256xf32>
    %29 = arith.mulf %27, %28 : vector<2x256xf32>
    %c0_7 = arith.constant 0 : index
    %30 = memref.load %arg3[%c0_7] : memref<3xf32, #tpu.memory_space<smem>>
    %31 = vector.shape_cast %29 : vector<2x256xf32> to vector<1x2x256xf32>
    %cst_8 = arith.constant dense<0.000000e+00> : vector<1xf32>
    %32 = vector.multi_reduction <add>, %31, %cst_8 [1, 2] : vector<1x2x256xf32> to vector<1xf32>
    %33 = vector.shape_cast %32 : vector<1xf32> to vector<1x1x1xf32>
    %34 = vector.extract %33[0, 0, 0] : f32 from vector<1x1x1xf32>
    %cst_9 = arith.constant 1.360000e+02 : f32
    %35 = arith.mulf %cst_9, %30 : f32
    %36 = arith.addf %34, %35 : f32
    %37 = arith.mulf %29, %29 : vector<2x256xf32>
    %38 = vector.shape_cast %37 : vector<2x256xf32> to vector<1x2x256xf32>
    %cst_10 = arith.constant dense<0.000000e+00> : vector<1xf32>
    %39 = vector.multi_reduction <add>, %38, %cst_10 [1, 2] : vector<1x2x256xf32> to vector<1xf32>
    %40 = vector.shape_cast %39 : vector<1xf32> to vector<1x1x1xf32>
    %41 = vector.extract %40[0, 0, 0] : f32 from vector<1x1x1xf32>
    %42 = arith.mulf %30, %30 : f32
    %cst_11 = arith.constant 1.360000e+02 : f32
    %43 = arith.mulf %cst_11, %42 : f32
    %44 = arith.addf %41, %43 : f32
    %cst_12 = arith.constant 0.00154320989 : f32
    %45 = arith.mulf %36, %cst_12 : f32
    %cst_13 = arith.constant 0.00154320989 : f32
    %46 = arith.mulf %44, %cst_13 : f32
    %47 = arith.mulf %45, %45 : f32
    %48 = arith.subf %46, %47 : f32
    %cst_14 = arith.constant 0.000000e+00 : f32
    %49 = arith.maximumf %48, %cst_14 : f32
    %cst_15 = arith.constant 9.99999974E-6 : f32
    %50 = arith.addf %49, %cst_15 : f32
    %51 = math.rsqrt %50 : f32
    %c0_16 = arith.constant 0 : index
    %52 = memref.load %arg4[%c0_16] : memref<3xf32, #tpu.memory_space<smem>>
    %53 = arith.mulf %51, %52 : f32
    %c0_17 = arith.constant 0 : index
    %54 = memref.load %arg5[%c0_17] : memref<3xf32, #tpu.memory_space<smem>>
    %55 = vector.broadcast %45 : f32 to vector<2x256xf32>
    %56 = arith.subf %29, %55 : vector<2x256xf32>
    %57 = vector.broadcast %53 : f32 to vector<2x256xf32>
    %58 = arith.mulf %56, %57 : vector<2x256xf32>
    %59 = vector.broadcast %54 : f32 to vector<2x256xf32>
    %60 = arith.addf %58, %59 : vector<2x256xf32>
    %c0_18 = arith.constant 0 : index
    %c0_19 = arith.constant 0 : index
    %c0_20 = arith.constant 0 : index
    %61 = vector.load %arg6[%c0_18, %c0_19, %c0_20] : memref<2x3x256xf32, #tpu.memory_space<vmem>>, vector<2x1x256xf32>
    %62 = vector.shape_cast %61 : vector<2x1x256xf32> to vector<2x256xf32>
    %63 = vector.shape_cast %60 : vector<2x256xf32> to vector<2x1x256xf32>
    tpu.vector_store %arg6[%c0_18, %c0_19, %c0_20], %63 {strides = array<i32>} : memref<2x3x256xf32, #tpu.memory_space<vmem>>, vector<2x1x256xf32>,
    %64 = arith.subf %30, %45 : f32
    %65 = arith.mulf %64, %53 : f32
    %66 = arith.addf %65, %54 : f32
    %67 = vector.broadcast %66 : f32 to vector<128xf32>
    %c0_21 = arith.constant 0 : index
    %c0_22 = arith.constant 0 : index
    %68 = vector.load %arg7[%c0_21, %c0_22] : memref<3x128xf32, #tpu.memory_space<vmem>>, vector<1x128xf32>
    %69 = vector.shape_cast %68 : vector<1x128xf32> to vector<128xf32>
    %70 = vector.shape_cast %67 : vector<128xf32> to vector<1x128xf32>
    tpu.vector_store %arg7[%c0_21, %c0_22], %70 {strides = array<i32>} : memref<3x128xf32, #tpu.memory_space<vmem>>, vector<1x128xf32>,
    %c1_23 = arith.constant 1 : index
    %71 = memref.load %arg2[%c1_23] : memref<3xf32, #tpu.memory_space<smem>>
    %c3 = arith.constant 3 : index
    %72 = memref.load %arg1[%c3] : memref<9xf32, #tpu.memory_space<smem>>
    %73 = vector.broadcast %72 : f32 to vector<2x256xf32>
    %74 = arith.mulf %73, %2 : vector<2x256xf32>
    %75 = vector.broadcast %71 : f32 to vector<2x256xf32>
    %76 = arith.addf %75, %74 : vector<2x256xf32>
    %c4 = arith.constant 4 : index
    %77 = memref.load %arg1[%c4] : memref<9xf32, #tpu.memory_space<smem>>
    %78 = vector.broadcast %77 : f32 to vector<2x256xf32>
    %79 = arith.mulf %78, %4 : vector<2x256xf32>
    %80 = arith.addf %76, %79 : vector<2x256xf32>
    %c5 = arith.constant 5 : index
    %81 = memref.load %arg1[%c5] : memref<9xf32, #tpu.memory_space<smem>>
    %82 = vector.broadcast %81 : f32 to vector<2x256xf32>
    %83 = arith.mulf %82, %6 : vector<2x256xf32>
    %84 = arith.addf %80, %83 : vector<2x256xf32>
    %cst_24 = arith.constant 3.000000e+00 : f32
    %85 = vector.broadcast %cst_24 : f32 to vector<2x256xf32>
    %86 = arith.addf %84, %85 : vector<2x256xf32>
    %cst_25 = arith.constant 0.000000e+00 : f32
    %cst_26 = arith.constant 6.000000e+00 : f32
    %87 = vector.broadcast %cst_25 : f32 to vector<2x256xf32>
    %88 = arith.maximumf %87, %86 : vector<2x256xf32>
    %89 = vector.broadcast %cst_26 : f32 to vector<2x256xf32>
    %90 = arith.minimumf %89, %88 : vector<2x256xf32>
    %91 = arith.mulf %84, %90 : vector<2x256xf32>
    %cst_27 = arith.constant 0.166666672 : f32
    %92 = vector.broadcast %cst_27 : f32 to vector<2x256xf32>
    %93 = arith.mulf %91, %92 : vector<2x256xf32>
    %c1_28 = arith.constant 1 : index
    %94 = memref.load %arg3[%c1_28] : memref<3xf32, #tpu.memory_space<smem>>
    %95 = vector.shape_cast %93 : vector<2x256xf32> to vector<1x2x256xf32>
    %cst_29 = arith.constant dense<0.000000e+00> : vector<1xf32>
    %96 = vector.multi_reduction <add>, %95, %cst_29 [1, 2] : vector<1x2x256xf32> to vector<1xf32>
    %97 = vector.shape_cast %96 : vector<1xf32> to vector<1x1x1xf32>
    %98 = vector.extract %97[0, 0, 0] : f32 from vector<1x1x1xf32>
    %cst_30 = arith.constant 1.360000e+02 : f32
    %99 = arith.mulf %cst_30, %94 : f32
    %100 = arith.addf %98, %99 : f32
    %101 = arith.mulf %93, %93 : vector<2x256xf32>
    %102 = vector.shape_cast %101 : vector<2x256xf32> to vector<1x2x256xf32>
    %cst_31 = arith.constant dense<0.000000e+00> : vector<1xf32>
    %103 = vector.multi_reduction <add>, %102, %cst_31 [1, 2] : vector<1x2x256xf32> to vector<1xf32>
    %104 = vector.shape_cast %103 : vector<1xf32> to vector<1x1x1xf32>
    %105 = vector.extract %104[0, 0, 0] : f32 from vector<1x1x1xf32>
    %106 = arith.mulf %94, %94 : f32
    %cst_32 = arith.constant 1.360000e+02 : f32
    %107 = arith.mulf %cst_32, %106 : f32
    %108 = arith.addf %105, %107 : f32
    %cst_33 = arith.constant 0.00154320989 : f32
    %109 = arith.mulf %100, %cst_33 : f32
    %cst_34 = arith.constant 0.00154320989 : f32
    %110 = arith.mulf %108, %cst_34 : f32
    %111 = arith.mulf %109, %109 : f32
    %112 = arith.subf %110, %111 : f32
    %cst_35 = arith.constant 0.000000e+00 : f32
    %113 = arith.maximumf %112, %cst_35 : f32
    %cst_36 = arith.constant 9.99999974E-6 : f32
    %114 = arith.addf %113, %cst_36 : f32
    %115 = math.rsqrt %114 : f32
    %c1_37 = arith.constant 1 : index
    %116 = memref.load %arg4[%c1_37] : memref<3xf32, #tpu.memory_space<smem>>
    %117 = arith.mulf %115, %116 : f32
    %c1_38 = arith.constant 1 : index
    %118 = memref.load %arg5[%c1_38] : memref<3xf32, #tpu.memory_space<smem>>
    %119 = vector.broadcast %109 : f32 to vector<2x256xf32>
    %120 = arith.subf %93, %119 : vector<2x256xf32>
    %121 = vector.broadcast %117 : f32 to vector<2x256xf32>
    %122 = arith.mulf %120, %121 : vector<2x256xf32>
    %123 = vector.broadcast %118 : f32 to vector<2x256xf32>
    %124 = arith.addf %122, %123 : vector<2x256xf32>
    %c0_39 = arith.constant 0 : index
    %c1_40 = arith.constant 1 : index
    %c0_41 = arith.constant 0 : index
    %125 = vector.load %arg6[%c0_39, %c1_40, %c0_41] : memref<2x3x256xf32, #tpu.memory_space<vmem>>, vector<2x1x256xf32>
    %126 = vector.shape_cast %125 : vector<2x1x256xf32> to vector<2x256xf32>
    %127 = vector.shape_cast %124 : vector<2x256xf32> to vector<2x1x256xf32>
    tpu.vector_store %arg6[%c0_39, %c1_40, %c0_41], %127 {strides = array<i32>} : memref<2x3x256xf32, #tpu.memory_space<vmem>>, vector<2x1x256xf32>,
    %128 = arith.subf %94, %109 : f32
    %129 = arith.mulf %128, %117 : f32
    %130 = arith.addf %129, %118 : f32
    %131 = vector.broadcast %130 : f32 to vector<128xf32>
    %c1_42 = arith.constant 1 : index
    %c0_43 = arith.constant 0 : index
    %132 = vector.load %arg7[%c1_42, %c0_43] : memref<3x128xf32, #tpu.memory_space<vmem>>, vector<1x128xf32>
    %133 = vector.shape_cast %132 : vector<1x128xf32> to vector<128xf32>
    %134 = vector.shape_cast %131 : vector<128xf32> to vector<1x128xf32>
    tpu.vector_store %arg7[%c1_42, %c0_43], %134 {strides = array<i32>} : memref<3x128xf32, #tpu.memory_space<vmem>>, vector<1x128xf32>,
    %c2_44 = arith.constant 2 : index
    %135 = memref.load %arg2[%c2_44] : memref<3xf32, #tpu.memory_space<smem>>
    %c6 = arith.constant 6 : index
    %136 = memref.load %arg1[%c6] : memref<9xf32, #tpu.memory_space<smem>>
    %137 = vector.broadcast %136 : f32 to vector<2x256xf32>
    %138 = arith.mulf %137, %2 : vector<2x256xf32>
    %139 = vector.broadcast %135 : f32 to vector<2x256xf32>
    %140 = arith.addf %139, %138 : vector<2x256xf32>
    %c7 = arith.constant 7 : index
    %141 = memref.load %arg1[%c7] : memref<9xf32, #tpu.memory_space<smem>>
    %142 = vector.broadcast %141 : f32 to vector<2x256xf32>
    %143 = arith.mulf %142, %4 : vector<2x256xf32>
    %144 = arith.addf %140, %143 : vector<2x256xf32>
    %c8 = arith.constant 8 : index
    %145 = memref.load %arg1[%c8] : memref<9xf32, #tpu.memory_space<smem>>
    %146 = vector.broadcast %145 : f32 to vector<2x256xf32>
    %147 = arith.mulf %146, %6 : vector<2x256xf32>
    %148 = arith.addf %144, %147 : vector<2x256xf32>
    %cst_45 = arith.constant 3.000000e+00 : f32
    %149 = vector.broadcast %cst_45 : f32 to vector<2x256xf32>
    %150 = arith.addf %148, %149 : vector<2x256xf32>
    %cst_46 = arith.constant 0.000000e+00 : f32
    %cst_47 = arith.constant 6.000000e+00 : f32
    %151 = vector.broadcast %cst_46 : f32 to vector<2x256xf32>
    %152 = arith.maximumf %151, %150 : vector<2x256xf32>
    %153 = vector.broadcast %cst_47 : f32 to vector<2x256xf32>
    %154 = arith.minimumf %153, %152 : vector<2x256xf32>
    %155 = arith.mulf %148, %154 : vector<2x256xf32>
    %cst_48 = arith.constant 0.166666672 : f32
    %156 = vector.broadcast %cst_48 : f32 to vector<2x256xf32>
    %157 = arith.mulf %155, %156 : vector<2x256xf32>
    %c2_49 = arith.constant 2 : index
    %158 = memref.load %arg3[%c2_49] : memref<3xf32, #tpu.memory_space<smem>>
    %159 = vector.shape_cast %157 : vector<2x256xf32> to vector<1x2x256xf32>
    %cst_50 = arith.constant dense<0.000000e+00> : vector<1xf32>
    %160 = vector.multi_reduction <add>, %159, %cst_50 [1, 2] : vector<1x2x256xf32> to vector<1xf32>
    %161 = vector.shape_cast %160 : vector<1xf32> to vector<1x1x1xf32>
    %162 = vector.extract %161[0, 0, 0] : f32 from vector<1x1x1xf32>
    %cst_51 = arith.constant 1.360000e+02 : f32
    %163 = arith.mulf %cst_51, %158 : f32
    %164 = arith.addf %162, %163 : f32
    %165 = arith.mulf %157, %157 : vector<2x256xf32>
    %166 = vector.shape_cast %165 : vector<2x256xf32> to vector<1x2x256xf32>
    %cst_52 = arith.constant dense<0.000000e+00> : vector<1xf32>
    %167 = vector.multi_reduction <add>, %166, %cst_52 [1, 2] : vector<1x2x256xf32> to vector<1xf32>
    %168 = vector.shape_cast %167 : vector<1xf32> to vector<1x1x1xf32>
    %169 = vector.extract %168[0, 0, 0] : f32 from vector<1x1x1xf32>
    %170 = arith.mulf %158, %158 : f32
    %cst_53 = arith.constant 1.360000e+02 : f32
    %171 = arith.mulf %cst_53, %170 : f32
    %172 = arith.addf %169, %171 : f32
    %cst_54 = arith.constant 0.00154320989 : f32
    %173 = arith.mulf %164, %cst_54 : f32
    %cst_55 = arith.constant 0.00154320989 : f32
    %174 = arith.mulf %172, %cst_55 : f32
    %175 = arith.mulf %173, %173 : f32
    %176 = arith.subf %174, %175 : f32
    %cst_56 = arith.constant 0.000000e+00 : f32
    %177 = arith.maximumf %176, %cst_56 : f32
    %cst_57 = arith.constant 9.99999974E-6 : f32
    %178 = arith.addf %177, %cst_57 : f32
    %179 = math.rsqrt %178 : f32
    %c2_58 = arith.constant 2 : index
    %180 = memref.load %arg4[%c2_58] : memref<3xf32, #tpu.memory_space<smem>>
    %181 = arith.mulf %179, %180 : f32
    %c2_59 = arith.constant 2 : index
    %182 = memref.load %arg5[%c2_59] : memref<3xf32, #tpu.memory_space<smem>>
    %183 = vector.broadcast %173 : f32 to vector<2x256xf32>
    %184 = arith.subf %157, %183 : vector<2x256xf32>
    %185 = vector.broadcast %181 : f32 to vector<2x256xf32>
    %186 = arith.mulf %184, %185 : vector<2x256xf32>
    %187 = vector.broadcast %182 : f32 to vector<2x256xf32>
    %188 = arith.addf %186, %187 : vector<2x256xf32>
    %c0_60 = arith.constant 0 : index
    %c2_61 = arith.constant 2 : index
    %c0_62 = arith.constant 0 : index
    %189 = vector.load %arg6[%c0_60, %c2_61, %c0_62] : memref<2x3x256xf32, #tpu.memory_space<vmem>>, vector<2x1x256xf32>
    %190 = vector.shape_cast %189 : vector<2x1x256xf32> to vector<2x256xf32>
    %191 = vector.shape_cast %188 : vector<2x256xf32> to vector<2x1x256xf32>
    tpu.vector_store %arg6[%c0_60, %c2_61, %c0_62], %191 {strides = array<i32>} : memref<2x3x256xf32, #tpu.memory_space<vmem>>, vector<2x1x256xf32>,
    %192 = arith.subf %158, %173 : f32
    %193 = arith.mulf %192, %181 : f32
    %194 = arith.addf %193, %182 : f32
    %195 = vector.broadcast %194 : f32 to vector<128xf32>
    %c2_63 = arith.constant 2 : index
    %c0_64 = arith.constant 0 : index
    %196 = vector.load %arg7[%c2_63, %c0_64] : memref<3x128xf32, #tpu.memory_space<vmem>>, vector<1x128xf32>
    %197 = vector.shape_cast %196 : vector<1x128xf32> to vector<128xf32>
    %198 = vector.shape_cast %195 : vector<128xf32> to vector<1x128xf32>
    tpu.vector_store %arg7[%c2_63, %c0_64], %198 {strides = array<i32>} : memref<3x128xf32, #tpu.memory_space<vmem>>, vector<1x128xf32>,
    return
  }
}

</mosaic_0001>

<llo_original>
// kernel: tpu_custom_call.1
$region0: #{tpu_custom_call.1}
  #allocation0 [shape = 'u32[]', space=smem, size = 0x4, offset = 0x4, fixed_abs, tag = 'smem constant byte address 0x4 - core index']
  #allocation1 [shape = 'u32[144,128]{1,0:T(1,128)}', space=vmem, size = 0x12000, scoped, tag = 'internal scratch']
  %s0 = inlined_call_operand.vmem [shape: f32[2,3,256], index: 0, kind: input, shape index: {}]
  %s1 = inlined_call_operand.vmem [shape: f32[9], index: 1, kind: input, shape index: {}]
  %s2 = inlined_call_operand.vmem [shape: f32[3], index: 2, kind: input, shape index: {}]
  %s3 = inlined_call_operand.vmem [shape: f32[3], index: 3, kind: input, shape index: {}]
  %s4 = inlined_call_operand.vmem [shape: f32[3], index: 4, kind: input, shape index: {}]
  %s5 = inlined_call_operand.vmem [shape: f32[3], index: 5, kind: input, shape index: {}]
  %s6 = inlined_call_operand.vmem [shape: f32[2,3,256], index: 6, kind: output, shape index: {0}]
  %s7 = inlined_call_operand.hbm [shape: f32[3,128], index: 7, kind: output, shape index: {1}]
  %8 = xla_tuple %s6, %s7
  %s9 = sld [smem:[#allocation0]]
  $region62: #{tpu_custom_call.1} parent=0
    _
  %s11 = ssub.s32 1, %s9
  %s12 = scalar_select 0, %s11, %s9
  $region1: #{tpu_custom_call.1} parent=0
    #allocation2 [shape = 'u8[512]{0}', space=smem, size = 0x200, scoped, tag = 'input window, operand 1, single buffered']
    #allocation3 [shape = 's32[1]{0}', space=sflag, size = 0x4, scoped, tag = 'scoped memory for tpu_custom_call.1']
    #allocation4 [shape = 's32[1]{0}', space=sflag, size = 0x4, scoped, tag = 'scoped memory for tpu_custom_call.1']
    #allocation5 [shape = 'u8[512]{0}', space=smem, size = 0x200, scoped, tag = 'input window, operand 2, single buffered']
    #allocation6 [shape = 's32[1]{0}', space=sflag, size = 0x4, scoped, tag = 'scoped memory for tpu_custom_call.1']
    #allocation7 [shape = 'u8[512]{0}', space=smem, size = 0x200, scoped, tag = 'input window, operand 3, single buffered']
    #allocation8 [shape = 'u8[512]{0}', space=smem, size = 0x200, scoped, tag = 'input window, operand 4, single buffered']
    #allocation9 [shape = 's32[1]{0}', space=sflag, size = 0x4, scoped, tag = 'scoped memory for tpu_custom_call.1']
    #allocation10 [shape = 'u8[512]{0}', space=smem, size = 0x200, scoped, tag = 'input window, operand 5, single buffered']
    #allocation11 [shape = 'u8[2048]{0}', space=vmem, size = 0x800, scoped, tag = 'output window, operand 1, single buffered']
    %13 = vsyncpa [#allocation4], 0
    %14 = vsyncpa [#allocation6], 0
    %15 = vsyncpa [#allocation9], 0
    %16 = vsyncpa [#allocation3], 0
    // Predicated region
    $region2: #{tpu_custom_call.1} parent=1 // pred_check
      _
    $region3: #{tpu_custom_call.1} parent=1 // pred_check_branch
      %18 = sbr.rel (0) target = $region5
    $region4: #{tpu_custom_call.1} parent=1 // pred_region
      _
    $region5: #{tpu_custom_call.1} parent=1 // pred_fallthru
      _
    // Predicated region
    $region6: #{tpu_custom_call.1} parent=1 // pred_check
      _
    $region7: #{tpu_custom_call.1} parent=1 // pred_check_branch
      %20 = sbr.rel (0) target = $region9
    $region8: #{tpu_custom_call.1} parent=1 // pred_region
      %s22 = ssub.s32 16, 16
      %23 = vsyncadd [#allocation4], %s22
      %s25 = sshll.u32 %s1, 4
      %s26 = int_to_ptr.vmem [resolvable:$true] %s25
      %28 = dma.vmem_to_smem %s26, 16, [#allocation2], [#allocation4]
    $region9: #{tpu_custom_call.1} parent=1 // pred_fallthru
      _
    // Predicated region
    $region10: #{tpu_custom_call.1} parent=1 // pred_check
      _
    $region11: #{tpu_custom_call.1} parent=1 // pred_check_branch
      %30 = sbr.rel (0) target = $region13
    $region12: #{tpu_custom_call.1} parent=1 // pred_region
      %s32 = ssub.s32 16, 16
      %33 = vsyncadd [#allocation6], %s32
      %s35 = sshll.u32 %s2, 4
      %s36 = int_to_ptr.vmem [resolvable:$true] %s35
      %38 = dma.vmem_to_smem %s36, 16, [#allocation5], [#allocation6]
    $region13: #{tpu_custom_call.1} parent=1 // pred_fallthru
      _
    // Predicated region
    $region14: #{tpu_custom_call.1} parent=1 // pred_check
      _
    $region15: #{tpu_custom_call.1} parent=1 // pred_check_branch
      %40 = sbr.rel (0) target = $region17
    $region16: #{tpu_custom_call.1} parent=1 // pred_region
      %s42 = ssub.s32 16, 16
      %43 = vsyncadd [#allocation6], %s42
      %s45 = sshll.u32 %s3, 4
      %s46 = int_to_ptr.vmem [resolvable:$true] %s45
      %48 = dma.vmem_to_smem %s46, 16, [#allocation7], [#allocation6]
    $region17: #{tpu_custom_call.1} parent=1 // pred_fallthru
      _
    // Predicated region
    $region18: #{tpu_custom_call.1} parent=1 // pred_check
      _
    $region19: #{tpu_custom_call.1} parent=1 // pred_check_branch
      %50 = sbr.rel (0) target = $region21
    $region20: #{tpu_custom_call.1} parent=1 // pred_region
      %s52 = ssub.s32 16, 16
      %53 = vsyncadd [#allocation9], %s52
      %s55 = sshll.u32 %s4, 4
      %s56 = int_to_ptr.vmem [resolvable:$true] %s55
      %58 = dma.vmem_to_smem %s56, 16, [#allocation8], [#allocation9]
    $region21: #{tpu_custom_call.1} parent=1 // pred_fallthru
      _
    // Predicated region
    $region22: #{tpu_custom_call.1} parent=1 // pred_check
      _
    $region23: #{tpu_custom_call.1} parent=1 // pred_check_branch
      %60 = sbr.rel (0) target = $region25
    $region24: #{tpu_custom_call.1} parent=1 // pred_region
      %s62 = ssub.s32 16, 16
      %63 = vsyncadd [#allocation9], %s62
      %s65 = sshll.u32 %s5, 4
      %s66 = int_to_ptr.vmem [resolvable:$true] %s65
      %68 = dma.vmem_to_smem %s66, 16, [#allocation10], [#allocation9]
    $region25: #{tpu_custom_call.1} parent=1 // pred_fallthru
      _
    // Predicated region
    $region26: #{tpu_custom_call.1} parent=1 // pred_check
      _
    $region27: #{tpu_custom_call.1} parent=1 // pred_check_branch
      %70 = sbr.rel (0) target = $region29
    $region28: #{tpu_custom_call.1} parent=1 // pred_region
      %71 = dma.done [#allocation4], 16
    $region29: #{tpu_custom_call.1} parent=1 // pred_fallthru
      _
    // Predicated region
    $region30: #{tpu_custom_call.1} parent=1 // pred_check
      _
    $region31: #{tpu_custom_call.1} parent=1 // pred_check_branch
      %73 = sbr.rel (0) target = $region33
    $region32: #{tpu_custom_call.1} parent=1 // pred_region
      %74 = dma.done [#allocation6], 16
    $region33: #{tpu_custom_call.1} parent=1 // pred_fallthru
      _
    // Predicated region
    $region34: #{tpu_custom_call.1} parent=1 // pred_check
      _
    $region35: #{tpu_custom_call.1} parent=1 // pred_check_branch
      %76 = sbr.rel (0) target = $region37
    $region36: #{tpu_custom_call.1} parent=1 // pred_region
      %77 = dma.done [#allocation6], 16
    $region37: #{tpu_custom_call.1} parent=1 // pred_fallthru
      _
    // Predicated region
    $region38: #{tpu_custom_call.1} parent=1 // pred_check
      _
    $region39: #{tpu_custom_call.1} parent=1 // pred_check_branch
      %79 = sbr.rel (0) target = $region41
    $region40: #{tpu_custom_call.1} parent=1 // pred_region
      %80 = dma.done [#allocation9], 16
    $region41: #{tpu_custom_call.1} parent=1 // pred_fallthru
      _
    // Predicated region
    $region42: #{tpu_custom_call.1} parent=1 // pred_check
      _
    $region43: #{tpu_custom_call.1} parent=1 // pred_check_branch
      %82 = sbr.rel (0) target = $region45
    $region44: #{tpu_custom_call.1} parent=1 // pred_region
      %83 = dma.done [#allocation9], 16
    $region45: #{tpu_custom_call.1} parent=1 // pred_fallthru
      _
    %84 = sfence
    %v85 = vld [vmem:[%s0] sm:$0x77]
    %v86 = vld [vmem:[%s0 + $0x8] sm:$0x77]
    %s87 = sld [smem:[#allocation5]]
    %s88 = sld [smem:[#allocation2]]
    %v89 = vstv %s88
    %v90 = vmul.f32 %v89, %v85
    %v91 = vmul.f32 %v89, %v86
    %v92 = vstv %s87
    %v93 = vadd.f32 %v92, %v90
    %v94 = vadd.f32 %v92, %v91
    %s95 = sld [smem:[#allocation2 + $0x1]]
    %v96 = vstv %s95
    %v97 = vmul.f32 %v96, %v85
    %v98 = vmul.f32 %v96, %v86
    %v101 = vrot.slane %v97, 5
    %v102 = vrot.slane %v101, 4
    %v103 = vrot.slane %v98, 5
    %v104 = vrot.slane %v103, 4
    %v107 = vadd.f32 %v93, %v102
    %v108 = vadd.f32 %v94, %v104
    %s109 = sld [smem:[#allocation2 + $0x2]]
    %v110 = vstv %s109
    %v111 = vmul.f32 %v110, %v85
    %v112 = vmul.f32 %v110, %v86
    %v115 = vrot.slane %v111, 6
    %v116 = vrot.slane %v115, 4
    %v117 = vrot.slane %v112, 6
    %v118 = vrot.slane %v117, 4
    %v121 = vadd.f32 %v107, %v116
    %v122 = vadd.f32 %v108, %v118
    %v123 = vadd.f32 %v121, 3.0
    %v124 = vadd.f32 %v122, 3.0
    %v125 = vmax.f32 %v123, 0.0
    %v126 = vmax.f32 %v124, 0.0
    %v127 = vmin.f32 %v125, 6.0
    %v128 = vmin.f32 %v126, 6.0
    %v129 = vmul.f32 %v121, %v127
    %v130 = vmul.f32 %v122, %v128
    %v131 = vmul.f32 %v129, 0.16666667
    %v132 = vmul.f32 %v130, 0.16666667
    %s133 = sld [smem:[#allocation7]]
    %v136 = vlaneseq
    %v137 = vshrl.u32 %v136, 7
    %v138 = vsub.s32 0, %v137
    %v139 = vrot.slane %v131, %v138
    %v140 = vlaneseq
    %v141 = vshrl.u32 %v140, 7
    %v142 = vsub.s32 4, %v141
    %v143 = vrot.slane %v131, %v142
    %v144 = vlaneseq
    %v145 = vshrl.u32 %v144, 7
    %v146 = vsub.s32 0, %v145
    %v147 = vrot.slane %v132, %v146
    %v148 = vlaneseq
    %v149 = vshrl.u32 %v148, 7
    %v150 = vsub.s32 4, %v149
    %v151 = vrot.slane %v132, %v150
    %vm152 = vcmask 1041409
    %v153 = vsel %vm152, %v147, %v139
    %v154 = vsel %vm152, %v151, %v143
    %vm157 = vcmask 1041408
    %v158 = vsel %vm157, %v153, 0.0
    %v159 = vsel %vm157, %v154, 0.0
    %v160 = vadd.f32 %v158, %v159
    %161 = vadd.xlane.f32.xlu0 %v160
    %v162 = vpop.xlane.xlu0 %161
    %v163 = vrot.slane %v162, 4
    %v164 = vadd.f32 %v162, %v163
    %v165 = vrot.slane %v164, 2
    %v166 = vadd.f32 %v164, %v165
    %v167 = vrot.slane %v166, 1
    %v168 = vadd.f32 %v166, %v167
    %s169 = vtos %v168
    %s170 = smul.f32 %s133, 136.0
    %s171 = sadd.f32 %s169, %s170
    %v172 = vmul.f32 %v131, %v131
    %v173 = vmul.f32 %v132, %v132
    %v176 = vlaneseq
    %v177 = vshrl.u32 %v176, 7
    %v178 = vsub.s32 0, %v177
    %v179 = vrot.slane %v172, %v178
    %v180 = vlaneseq
    %v181 = vshrl.u32 %v180, 7
    %v182 = vsub.s32 4, %v181
    %v183 = vrot.slane %v172, %v182
    %v184 = vlaneseq
    %v185 = vshrl.u32 %v184, 7
    %v186 = vsub.s32 0, %v185
    %v187 = vrot.slane %v173, %v186
    %v188 = vlaneseq
    %v189 = vshrl.u32 %v188, 7
    %v190 = vsub.s32 4, %v189
    %v191 = vrot.slane %v173, %v190
    %v192 = vsel %vm152, %v187, %v179
    %v193 = vsel %vm152, %v191, %v183
    %v196 = vsel %vm157, %v192, 0.0
    %v197 = vsel %vm157, %v193, 0.0
    %v198 = vadd.f32 %v196, %v197
    %199 = vadd.xlane.f32.xlu0 %v198
    %v200 = vpop.xlane.xlu0 %199
    %v201 = vrot.slane %v200, 4
    %v202 = vadd.f32 %v200, %v201
    %v203 = vrot.slane %v202, 2
    %v204 = vadd.f32 %v202, %v203
    %v205 = vrot.slane %v204, 1
    %v206 = vadd.f32 %v204, %v205
    %s207 = vtos %v206
    %s208 = smul.f32 %s133, %s133
    %s209 = smul.f32 %s208, 136.0
    %s210 = sadd.f32 %s207, %s209
    %s211 = smul.f32 %s171, 0.0015432099
    %s212 = smul.f32 %s210, 0.0015432099
    %s213 = smul.f32 %s211, %s211
    %s214 = ssub.f32 %s212, %s213
    %s215 = smax.f32 %s214, 0.0
    %s216 = sadd.f32 %s215, 1e-05
    %v217 = vstv %s216
    %v218 = vrsqrt.pop %v217
    %s219 = vtos %v218
    %s220 = sld [smem:[#allocation8]]
    %s221 = smul.f32 %s219, %s220
    %s222 = sld [smem:[#allocation10]]
    %v223 = vstv %s211
    %v224 = vsub.f32 %v131, %v223
    %v225 = vsub.f32 %v132, %v223
    %v226 = vstv %s221
    %v227 = vmul.f32 %v224, %v226
    %v228 = vmul.f32 %v225, %v226
    %v229 = vstv %s222
    %v230 = vadd.f32 %v227, %v229
    %v231 = vadd.f32 %v228, %v229
    %v235 = vunpack.c.l.s4 1966171168
    %v236 = vunpack.c.0.s8 %v235
    %v237 = vlaneseq
    %v238 = vshrl.u32 %v237, 7
    %v239 = vsub.s32 %v236, %v238
    %v240 = vrot.slane %v230, %v239
    %v242 = vunpack.c.l.s4 1966171168
    %v243 = vunpack.c.0.s8 %v242
    %v244 = vlaneseq
    %v245 = vshrl.u32 %v244, 7
    %v246 = vsub.s32 %v243, %v245
    %v247 = vrot.slane %v240, %v246
    %v249 = vunpack.c.l.s4 1966171168
    %v250 = vunpack.c.0.s8 %v249
    %v251 = vlaneseq
    %v252 = vshrl.u32 %v251, 7
    %v253 = vsub.s32 %v250, %v252
    %v254 = vrot.slane %v231, %v253
    %v256 = vunpack.c.l.s4 1966171168
    %v257 = vunpack.c.0.s8 %v256
    %v258 = vlaneseq
    %v259 = vshrl.u32 %v258, 7
    %v260 = vsub.s32 %v257, %v259
    %v261 = vrot.slane %v254, %v260
    %v264 = vlaneseq
    %vm265 = vcmp.ge.s32.totalorder %v264, 0
    %vm266 = vcmp.lt.s32.totalorder %v264, 256
    %vm267 = vmand %vm265, %vm266
    %268 = vst.msk [vmem:[%s6] ss:$4 sm:$0x3] %vm267, %v247
    %s269 = scalar_lea.vmem %s6, 8
    %270 = vst.msk [vmem:[%s269] ss:$4 sm:$0x3] %vm267, %v261
    %s271 = ssub.f32 %s133, %s211
    %s272 = smul.f32 %s271, %s221
    %s273 = sadd.f32 %s272, %s222
    %v274 = vstv %s273
    %275 = vst [vmem:[#allocation11] sm:$0x1] %v274
    %s276 = sld [smem:[#allocation5 + $0x1]]
    %s277 = sld [smem:[#allocation2 + $0x3]]
    %v278 = vstv %s277
    %v279 = vmul.f32 %v278, %v85
    %v280 = vmul.f32 %v278, %v86
    %v281 = vstv %s276
    %v282 = vadd.f32 %v281, %v279
    %v283 = vadd.f32 %v281, %v280
    %s284 = sld [smem:[#allocation2 + $0x4]]
    %v285 = vstv %s284
    %v286 = vmul.f32 %v285, %v85
    %v287 = vmul.f32 %v285, %v86
    %v290 = vrot.slane %v286, 5
    %v291 = vrot.slane %v290, 4
    %v292 = vrot.slane %v287, 5
    %v293 = vrot.slane %v292, 4
    %v296 = vadd.f32 %v282, %v291
    %v297 = vadd.f32 %v283, %v293
    %s298 = sld [smem:[#allocation2 + $0x5]]
    %v299 = vstv %s298
    %v300 = vmul.f32 %v299, %v85
    %v301 = vmul.f32 %v299, %v86
    %v304 = vrot.slane %v300, 6
    %v305 = vrot.slane %v304, 4
    %v306 = vrot.slane %v301, 6
    %v307 = vrot.slane %v306, 4
    %v310 = vadd.f32 %v296, %v305
    %v311 = vadd.f32 %v297, %v307
    %v312 = vadd.f32 %v310, 3.0
    %v313 = vadd.f32 %v311, 3.0
    %v314 = vmax.f32 %v312, 0.0
    %v315 = vmax.f32 %v313, 0.0
    %v316 = vmin.f32 %v314, 6.0
    %v317 = vmin.f32 %v315, 6.0
    %v318 = vmul.f32 %v310, %v316
    %v319 = vmul.f32 %v311, %v317
    %v320 = vmul.f32 %v318, 0.16666667
    %v321 = vmul.f32 %v319, 0.16666667
    %s322 = sld [smem:[#allocation7 + $0x1]]
    %v325 = vlaneseq
    %v326 = vshrl.u32 %v325, 7
    %v327 = vsub.s32 0, %v326
    %v328 = vrot.slane %v320, %v327
    %v329 = vlaneseq
    %v330 = vshrl.u32 %v329, 7
    %v331 = vsub.s32 4, %v330
    %v332 = vrot.slane %v320, %v331
    %v333 = vlaneseq
    %v334 = vshrl.u32 %v333, 7
    %v335 = vsub.s32 0, %v334
    %v336 = vrot.slane %v321, %v335
    %v337 = vlaneseq
    %v338 = vshrl.u32 %v337, 7
    %v339 = vsub.s32 4, %v338
    %v340 = vrot.slane %v321, %v339
    %v341 = vsel %vm152, %v336, %v328
    %v342 = vsel %vm152, %v340, %v332
    %v345 = vsel %vm157, %v341, 0.0
    %v346 = vsel %vm157, %v342, 0.0
    %v347 = vadd.f32 %v345, %v346
    %348 = vadd.xlane.f32.xlu0 %v347
    %v349 = vpop.xlane.xlu0 %348
    %v350 = vrot.slane %v349, 4
    %v351 = vadd.f32 %v349, %v350
    %v352 = vrot.slane %v351, 2
    %v353 = vadd.f32 %v351, %v352
    %v354 = vrot.slane %v353, 1
    %v355 = vadd.f32 %v353, %v354
    %s356 = vtos %v355
    %s357 = smul.f32 %s322, 136.0
    %s358 = sadd.f32 %s356, %s357
    %v359 = vmul.f32 %v320, %v320
    %v360 = vmul.f32 %v321, %v321
    %v363 = vlaneseq
    %v364 = vshrl.u32 %v363, 7
    %v365 = vsub.s32 0, %v364
    %v366 = vrot.slane %v359, %v365
    %v367 = vlaneseq
    %v368 = vshrl.u32 %v367, 7
    %v369 = vsub.s32 4, %v368
    %v370 = vrot.slane %v359, %v369
    %v371 = vlaneseq
    %v372 = vshrl.u32 %v371, 7
    %v373 = vsub.s32 0, %v372
    %v374 = vrot.slane %v360, %v373
    %v375 = vlaneseq
    %v376 = vshrl.u32 %v375, 7
    %v377 = vsub.s32 4, %v376
    %v378 = vrot.slane %v360, %v377
    %v379 = vsel %vm152, %v374, %v366
    %v380 = vsel %vm152, %v378, %v370
    %v383 = vsel %vm157, %v379, 0.0
    %v384 = vsel %vm157, %v380, 0.0
    %v385 = vadd.f32 %v383, %v384
    %386 = vadd.xlane.f32.xlu0 %v385
    %v387 = vpop.xlane.xlu0 %386
    %v388 = vrot.slane %v387, 4
    %v389 = vadd.f32 %v387, %v388
    %v390 = vrot.slane %v389, 2
    %v391 = vadd.f32 %v389, %v390
    %v392 = vrot.slane %v391, 1
    %v393 = vadd.f32 %v391, %v392
    %s394 = vtos %v393
    %s395 = smul.f32 %s322, %s322
    %s396 = smul.f32 %s395, 136.0
    %s397 = sadd.f32 %s394, %s396
    %s398 = smul.f32 %s358, 0.0015432099
    %s399 = smul.f32 %s397, 0.0015432099
    %s400 = smul.f32 %s398, %s398
    %s401 = ssub.f32 %s399, %s400
    %s402 = smax.f32 %s401, 0.0
    %s403 = sadd.f32 %s402, 1e-05
    %v404 = vstv %s403
    %v405 = vrsqrt.pop %v404
    %s406 = vtos %v405
    %s407 = sld [smem:[#allocation8 + $0x1]]
    %s408 = smul.f32 %s406, %s407
    %s409 = sld [smem:[#allocation10 + $0x1]]
    %v410 = vstv %s398
    %v411 = vsub.f32 %v320, %v410
    %v412 = vsub.f32 %v321, %v410
    %v413 = vstv %s408
    %v414 = vmul.f32 %v411, %v413
    %v415 = vmul.f32 %v412, %v413
    %v416 = vstv %s409
    %v417 = vadd.f32 %v414, %v416
    %v418 = vadd.f32 %v415, %v416
    %v422 = vunpack.c.l.s4 1966171168
    %v423 = vunpack.c.0.s8 %v422
    %v424 = vlaneseq
    %v425 = vshrl.u32 %v424, 7
    %v426 = vsub.s32 %v423, %v425
    %v427 = vrot.slane %v417, %v426
    %v429 = vunpack.c.l.s4 1966171168
    %v430 = vunpack.c.0.s8 %v429
    %v431 = vlaneseq
    %v432 = vshrl.u32 %v431, 7
    %v433 = vsub.s32 %v430, %v432
    %v434 = vrot.slane %v427, %v433
    %v436 = vunpack.c.l.s4 1966171168
    %v437 = vunpack.c.0.s8 %v436
    %v438 = vlaneseq
    %v439 = vshrl.u32 %v438, 7
    %v440 = vsub.s32 %v437, %v439
    %v441 = vrot.slane %v418, %v440
    %v443 = vunpack.c.l.s4 1966171168
    %v444 = vunpack.c.0.s8 %v443
    %v445 = vlaneseq
    %v446 = vshrl.u32 %v445, 7
    %v447 = vsub.s32 %v444, %v446
    %v448 = vrot.slane %v441, %v447
    %s451 = scalar_lea.vmem %s6, 1
    %452 = vst.msk [vmem:[%s451] ss:$4 sm:$0x3] %vm267, %v434
    %s453 = scalar_lea.vmem %s6, 9
    %454 = vst.msk [vmem:[%s453] ss:$4 sm:$0x3] %vm267, %v448
    %s455 = ssub.f32 %s322, %s398
    %s456 = smul.f32 %s455, %s408
    %s457 = sadd.f32 %s456, %s409
    %v458 = vstv %s457
    %459 = vst [vmem:[#allocation11 + $0x1] sm:$0x1] %v458
    %s460 = sld [smem:[#allocation5 + $0x2]]
    %s461 = sld [smem:[#allocation2 + $0x6]]
    %v462 = vstv %s461
    %v463 = vmul.f32 %v462, %v85
    %v464 = vmul.f32 %v462, %v86
    %v465 = vstv %s460
    %v466 = vadd.f32 %v465, %v463
    %v467 = vadd.f32 %v465, %v464
    %s468 = sld [smem:[#allocation2 + $0x7]]
    %v469 = vstv %s468
    %v470 = vmul.f32 %v469, %v85
    %v471 = vmul.f32 %v469, %v86
    %v474 = vrot.slane %v470, 5
    %v475 = vrot.slane %v474, 4
    %v476 = vrot.slane %v471, 5
    %v477 = vrot.slane %v476, 4
    %v480 = vadd.f32 %v466, %v475
    %v481 = vadd.f32 %v467, %v477
    %s482 = sld [smem:[#allocation2 + $0x8]]
    %v483 = vstv %s482
    %v484 = vmul.f32 %v483, %v85
    %v485 = vmul.f32 %v483, %v86
    %v488 = vrot.slane %v484, 6
    %v489 = vrot.slane %v488, 4
    %v490 = vrot.slane %v485, 6
    %v491 = vrot.slane %v490, 4
    %v494 = vadd.f32 %v480, %v489
    %v495 = vadd.f32 %v481, %v491
    %v496 = vadd.f32 %v494, 3.0
    %v497 = vadd.f32 %v495, 3.0
    %v498 = vmax.f32 %v496, 0.0
    %v499 = vmax.f32 %v497, 0.0
    %v500 = vmin.f32 %v498, 6.0
    %v501 = vmin.f32 %v499, 6.0
    %v502 = vmul.f32 %v494, %v500
    %v503 = vmul.f32 %v495, %v501
    %v504 = vmul.f32 %v502, 0.16666667
    %v505 = vmul.f32 %v503, 0.16666667
    %s506 = sld [smem:[#allocation7 + $0x2]]
    %v509 = vlaneseq
    %v510 = vshrl.u32 %v509, 7
    %v511 = vsub.s32 0, %v510
    %v512 = vrot.slane %v504, %v511
    %v513 = vlaneseq
    %v514 = vshrl.u32 %v513, 7
    %v515 = vsub.s32 4, %v514
    %v516 = vrot.slane %v504, %v515
    %v517 = vlaneseq
    %v518 = vshrl.u32 %v517, 7
    %v519 = vsub.s32 0, %v518
    %v520 = vrot.slane %v505, %v519
    %v521 = vlaneseq
    %v522 = vshrl.u32 %v521, 7
    %v523 = vsub.s32 4, %v522
    %v524 = vrot.slane %v505, %v523
    %v525 = vsel %vm152, %v520, %v512
    %v526 = vsel %vm152, %v524, %v516
    %v529 = vsel %vm157, %v525, 0.0
    %v530 = vsel %vm157, %v526, 0.0
    %v531 = vadd.f32 %v529, %v530
    %532 = vadd.xlane.f32.xlu0 %v531
    %v533 = vpop.xlane.xlu0 %532
    %v534 = vrot.slane %v533, 4
    %v535 = vadd.f32 %v533, %v534
    %v536 = vrot.slane %v535, 2
    %v537 = vadd.f32 %v535, %v536
    %v538 = vrot.slane %v537, 1
    %v539 = vadd.f32 %v537, %v538
    %s540 = vtos %v539
    %s541 = smul.f32 %s506, 136.0
    %s542 = sadd.f32 %s540, %s541
    %v543 = vmul.f32 %v504, %v504
    %v544 = vmul.f32 %v505, %v505
    %v547 = vlaneseq
    %v548 = vshrl.u32 %v547, 7
    %v549 = vsub.s32 0, %v548
    %v550 = vrot.slane %v543, %v549
    %v551 = vlaneseq
    %v552 = vshrl.u32 %v551, 7
    %v553 = vsub.s32 4, %v552
    %v554 = vrot.slane %v543, %v553
    %v555 = vlaneseq
    %v556 = vshrl.u32 %v555, 7
    %v557 = vsub.s32 0, %v556
    %v558 = vrot.slane %v544, %v557
    %v559 = vlaneseq
    %v560 = vshrl.u32 %v559, 7
    %v561 = vsub.s32 4, %v560
    %v562 = vrot.slane %v544, %v561
    %v563 = vsel %vm152, %v558, %v550
    %v564 = vsel %vm152, %v562, %v554
    %v567 = vsel %vm157, %v563, 0.0
    %v568 = vsel %vm157, %v564, 0.0
    %v569 = vadd.f32 %v567, %v568
    %570 = vadd.xlane.f32.xlu0 %v569
    %v571 = vpop.xlane.xlu0 %570
    %v572 = vrot.slane %v571, 4
    %v573 = vadd.f32 %v571, %v572
    %v574 = vrot.slane %v573, 2
    %v575 = vadd.f32 %v573, %v574
    %v576 = vrot.slane %v575, 1
    %v577 = vadd.f32 %v575, %v576
    %s578 = vtos %v577
    %s579 = smul.f32 %s506, %s506
    %s580 = smul.f32 %s579, 136.0
    %s581 = sadd.f32 %s578, %s580
    %s582 = smul.f32 %s542, 0.0015432099
    %s583 = smul.f32 %s581, 0.0015432099
    %s584 = smul.f32 %s582, %s582
    %s585 = ssub.f32 %s583, %s584
    %s586 = smax.f32 %s585, 0.0
    %s587 = sadd.f32 %s586, 1e-05
    %v588 = vstv %s587
    %v589 = vrsqrt.pop %v588
    %s590 = vtos %v589
    %s591 = sld [smem:[#allocation8 + $0x2]]
    %s592 = smul.f32 %s590, %s591
    %s593 = sld [smem:[#allocation10 + $0x2]]
    %v594 = vstv %s582
    %v595 = vsub.f32 %v504, %v594
    %v596 = vsub.f32 %v505, %v594
    %v597 = vstv %s592
    %v598 = vmul.f32 %v595, %v597
    %v599 = vmul.f32 %v596, %v597
    %v600 = vstv %s593
    %v601 = vadd.f32 %v598, %v600
    %v602 = vadd.f32 %v599, %v600
    %v606 = vunpack.c.l.s4 1966171168
    %v607 = vunpack.c.0.s8 %v606
    %v608 = vlaneseq
    %v609 = vshrl.u32 %v608, 7
    %v610 = vsub.s32 %v607, %v609
    %v611 = vrot.slane %v601, %v610
    %v613 = vunpack.c.l.s4 1966171168
    %v614 = vunpack.c.0.s8 %v613
    %v615 = vlaneseq
    %v616 = vshrl.u32 %v615, 7
    %v617 = vsub.s32 %v614, %v616
    %v618 = vrot.slane %v611, %v617
    %v620 = vunpack.c.l.s4 1966171168
    %v621 = vunpack.c.0.s8 %v620
    %v622 = vlaneseq
    %v623 = vshrl.u32 %v622, 7
    %v624 = vsub.s32 %v621, %v623
    %v625 = vrot.slane %v602, %v624
    %v627 = vunpack.c.l.s4 1966171168
    %v628 = vunpack.c.0.s8 %v627
    %v629 = vlaneseq
    %v630 = vshrl.u32 %v629, 7
    %v631 = vsub.s32 %v628, %v630
    %v632 = vrot.slane %v625, %v631
    %s635 = scalar_lea.vmem %s6, 2
    %636 = vst.msk [vmem:[%s635] ss:$4 sm:$0x3] %vm267, %v618
    %s637 = scalar_lea.vmem %s6, 10
    %638 = vst.msk [vmem:[%s637] ss:$4 sm:$0x3] %vm267, %v632
    %s639 = ssub.f32 %s506, %s582
    %s640 = smul.f32 %s639, %s592
    %s641 = sadd.f32 %s640, %s593
    %v642 = vstv %s641
    %643 = vst [vmem:[#allocation11 + $0x2] sm:$0x1] %v642
    // Predicated region
    $region46: #{tpu_custom_call.1} parent=1 // pred_check
      _
    $region47: #{tpu_custom_call.1} parent=1 // pred_check_branch
      %645 = sbr.rel (0) target = $region49
    $region48: #{tpu_custom_call.1} parent=1 // pred_region
      _
    $region49: #{tpu_custom_call.1} parent=1 // pred_fallthru
      _
    // Predicated region
    $region50: #{tpu_custom_call.1} parent=1 // pred_check
      _
    $region51: #{tpu_custom_call.1} parent=1 // pred_check_branch
      %647 = sbr.rel (0) target = $region53
    $region52: #{tpu_custom_call.1} parent=1 // pred_region
      %s649 = ssub.s32 64, 64
      %650 = vsyncadd [#allocation3], %s649
      %s652 = sshll.u32 [#allocation11], 4
      %s653 = int_to_ptr.vmem [resolvable:$true] %s652
      %655 = dma.vmem_to_hbm [thread:$0]  %s653, 64, %s7, [#allocation3]
    $region53: #{tpu_custom_call.1} parent=1 // pred_fallthru
      _
    // Predicated region
    $region54: #{tpu_custom_call.1} parent=1 // pred_check
      _
    $region55: #{tpu_custom_call.1} parent=1 // pred_check_branch
      %657 = sbr.rel (0) target = $region57
    $region56: #{tpu_custom_call.1} parent=1 // pred_region
      _
    $region57: #{tpu_custom_call.1} parent=1 // pred_fallthru
      _
    // Predicated region
    $region58: #{tpu_custom_call.1} parent=1 // pred_check
      _
    $region59: #{tpu_custom_call.1} parent=1 // pred_check_branch
      %659 = sbr.rel (0) target = $region61
    $region60: #{tpu_custom_call.1} parent=1 // pred_region
      %660 = dma.done [#allocation3], 64
    $region61: #{tpu_custom_call.1} parent=1 // pred_fallthru
      _
    %661 = vsyncpa [#allocation3], 1
    %662 = vsyncpa [#allocation4], 1
    %663 = vsyncpa [#allocation6], 1
    %664 = vsyncpa [#allocation9], 1

</llo_original>
